<compile_context>
chip_gen: v5e
topology: v5e:2x2
jax: 0.10.0
libtpu: 0.0.40
codegen_flags: <defaults>
</compile_context>

<pallas_src>
import functools

import jax
import jax.numpy as jnp
import numpy as np
from jax.experimental import pallas as pl
from jax.experimental.pallas import tpu as pltpu


def _focal_loss_kernel(x_ref, t_ref, w_ref, o_ref, *, gamma: float):
    # x_ref: (C, bb)  logits block  (classes on sublanes, batch on lanes)
    # t_ref: (1, bb)  int32 labels  (-1 marks a padded column -> contributes 0)
    # w_ref: (C, 1)   f32 class weights (resident across all grid steps)
    # o_ref: (1, 1)   f32 per-block partial sum of the loss
    x = x_ref[...].astype(jnp.float32)          # cast AFTER the DMA
    t = t_ref[...]                              # (1, bb) int32
    w = w_ref[...]                              # (C, 1) f32

    C, bb = x.shape
    cls = jax.lax.broadcasted_iota(jnp.int32, (C, bb), 0)   # class id per sublane
    is_tgt = cls == t                                       # (C, bb); t broadcasts over C

    # zi = -x everywhere except the target class row, where zi = +x.
    zi = jnp.where(is_tgt, x, -x)

    # Fused log-sigmoid / focal term:
    #   s           = softplus(-zi) = -log(sigmoid(zi)) = -log(pis)      (>= 0)
    #   (1-pis)^g   = exp(-g * softplus(zi)) = exp(-g * (zi + s))
    #   elem        = (1-pis)^g * (-log(pis)) = exp(-g*(zi+s)) * s       (>= 0)
    neg_zi = -zi
    # stable softplus written with exp/log only (guaranteed Mosaic lowering)
    s = jnp.maximum(neg_zi, 0.0) + jnp.log(1.0 + jnp.exp(-jnp.abs(neg_zi)))
    focal = jnp.exp(-gamma * (zi + s))
    elem = focal * s                                        # (C, bb)

    # weight[target[b]] via one-hot masked sum over the class (sublane) axis.
    # Padded columns (t == -1) match no class -> weight 0 -> zero contribution.
    cw = jnp.sum(jnp.where(is_tgt, w, 0.0), axis=0, keepdims=True)   # (1, bb)

    # loss = -sum_b w[t_b] * sum_c (1-p)^g * log(p) = +sum_{c,b} w[t_b] * elem
    o_ref[...] = jnp.sum(elem * cw, keepdims=True)          # (1, 1) partial


def focal_loss(logits, target, weight, gamma: float = 1.0, block_b: int | None = None):
    """Scalar focal loss matching the PyTorch FocalLoss.forward."""
    B, C = logits.shape

    # Lane-dense block over the batch axis, ~2 MiB per input buffer (safe for
    # the 64 MiB VMEM on v7x with double buffering, tiny on v5e/v6e).
    if block_b is None:
        itemsize = jnp.dtype(logits.dtype).itemsize
        block_b = (2 * 1024 * 1024) // max(C * itemsize, 1)
        block_b = max(128, min(4096, (block_b // 128) * 128))

    if B <= block_b:
        bb = B                       # single block == full array dims (no padding)
        num_blocks = 1
        b_pad = B
    else:
        bb = block_b                 # multiple of 128 -> lane-aligned blocks
        num_blocks = pl.cdiv(B, bb)
        b_pad = num_blocks * bb

    # Batch on the 128-lane axis; logits stay in their native dtype.
    x_t = jnp.transpose(logits)                              # (C, B)
    t = target.astype(jnp.int32)
    if b_pad != B:
        x_t = jnp.pad(x_t, ((0, 0), (0, b_pad - B)))
        t = jnp.pad(t, (0, b_pad - B), constant_values=-1)   # sentinel -> weight 0
    t2 = t.reshape(1, b_pad)
    w2 = weight.astype(jnp.float32).reshape(C, 1)

    partials = pl.pallas_call(
        functools.partial(_focal_loss_kernel, gamma=float(gamma)),
        grid=(num_blocks,),
        in_specs=[
            pl.BlockSpec((C, bb), lambda i: (0, i)),         # logits block
            pl.BlockSpec((1, bb), lambda i: (0, i)),         # labels block
            pl.BlockSpec((C, 1), lambda i: (0, 0)),          # weights, resident
        ],
        out_specs=pl.BlockSpec((1, 1), lambda i: (i, 0)),    # per-block partial
        out_shape=jax.ShapeDtypeStruct((num_blocks, 1), jnp.float32),
        compiler_params=pltpu.CompilerParams(
            dimension_semantics=("parallel",),               # megacore on v7x
        ),
    )(x_t, t2, w2)

    return jnp.sum(partials)


def _reference_focal_loss(logits, target, weight, gamma=1.0):
    # Pure-JAX reference mirroring the PyTorch forward exactly.
    B = logits.shape[0]
    x = logits.astype(jnp.float32)
    zi = -x
    zi = zi.at[jnp.arange(B), target].multiply(-1.0)
    pis = jax.nn.sigmoid(zi)
    first = (1.0 - pis) ** gamma
    second = jnp.log(pis)
    multipled = jnp.einsum("bj,bj->b", first, second)
    cw = weight[target].astype(jnp.float32)
    return -jnp.dot(cw, multipled)


if __name__ == "__main__":
    key = jax.random.PRNGKey(0)
    k_x, k_w, k_t = jax.random.split(key, 3)

    B, C = 8, 4  # batch of 8, 4 stance classes
    logits = jax.random.normal(k_x, (B, C), dtype=jnp.float32)
    weight = jax.random.uniform(k_w, (C,), dtype=jnp.float32, minval=0.5, maxval=1.5)
    target = jax.random.randint(k_t, (B,), 0, C, dtype=jnp.int32)

    for gamma in (1.0, 2.0):
        loss = jax.block_until_ready(focal_loss(logits, target, weight, gamma=gamma))
        ref = jax.block_until_ready(_reference_focal_loss(logits, target, weight, gamma))
        np.testing.assert_allclose(np.asarray(loss), np.asarray(ref), rtol=1e-5, atol=1e-5)

    print("KERNEL_OK")
</pallas_src>

<mosaic_0001>
module attributes {stable_mosaic.version = 11 : i64} {
  func.func @_focal_loss_kernel(%arg0: i32, %arg1: memref<4x8xf32, #tpu.memory_space<vmem>>, %arg2: memref<1x8xi32, #tpu.memory_space<vmem>>, %arg3: memref<4x1xf32, #tpu.memory_space<vmem>>, %arg4: memref<1x1xf32, #tpu.memory_space<vmem>>) attributes {dimension_semantics = [#tpu.dimension_semantics<parallel>], iteration_bounds = array<i64: 1>, scalar_prefetch = 0 : i64, scratch_operands = 0 : i64, tpu.core_type = #tpu.core_type<tc>, window_params = [{transform_indices = @transform_0, window_bounds = array<i64: 4, 8>}, {transform_indices = @transform_1, window_bounds = array<i64: 1, 8>}, {pipeline_mode = #tpu.pipeline_mode<synchronous>, transform_indices = @transform_2, window_bounds = array<i64: 4, 1>}, {transform_indices = @transform_3, window_bounds = array<i64: 1, 1>}]} {
    %c0 = arith.constant 0 : index
    %c0_0 = arith.constant 0 : index
    %0 = vector.load %arg1[%c0, %c0_0] : memref<4x8xf32, #tpu.memory_space<vmem>>, vector<4x8xf32>
    %c0_1 = arith.constant 0 : index
    %c0_2 = arith.constant 0 : index
    %1 = vector.load %arg2[%c0_1, %c0_2] : memref<1x8xi32, #tpu.memory_space<vmem>>, vector<1x8xi32>
    %c0_3 = arith.constant 0 : index
    %c0_4 = arith.constant 0 : index
    %2 = vector.load %arg3[%c0_3, %c0_4] : memref<4x1xf32, #tpu.memory_space<vmem>>, vector<4x1xf32>
    %3 = tpu.iota {dimensions = array<i32: 0>} : vector<4x8xi32>
    %4 = vector.broadcast %1 : vector<1x8xi32> to vector<4x8xi32>
    %5 = arith.cmpi eq, %3, %4 : vector<4x8xi32>
    %cst = arith.constant 0.000000e+00 : f32
    %6 = vector.broadcast %cst : f32 to vector<4x8xf32>
    %7 = arith.subf %6, %0 : vector<4x8xf32>
    %8 = arith.select %5, %0, %7 : vector<4x8xi1>, vector<4x8xf32>
    %cst_5 = arith.constant 0.000000e+00 : f32
    %9 = vector.broadcast %cst_5 : f32 to vector<4x8xf32>
    %10 = arith.subf %9, %8 : vector<4x8xf32>
    %cst_6 = arith.constant 0.000000e+00 : f32
    %11 = vector.broadcast %cst_6 : f32 to vector<4x8xf32>
    %12 = arith.maximumf %10, %11 : vector<4x8xf32>
    %13 = math.absf %10 : vector<4x8xf32>
    %cst_7 = arith.constant 0.000000e+00 : f32
    %14 = vector.broadcast %cst_7 : f32 to vector<4x8xf32>
    %15 = arith.subf %14, %13 : vector<4x8xf32>
    %16 = math.exp %15 : vector<4x8xf32>
    %cst_8 = arith.constant 1.000000e+00 : f32
    %17 = vector.broadcast %cst_8 : f32 to vector<4x8xf32>
    %18 = arith.addf %17, %16 : vector<4x8xf32>
    %19 = math.log %18 : vector<4x8xf32>
    %20 = arith.addf %12, %19 : vector<4x8xf32>
    %21 = arith.addf %8, %20 : vector<4x8xf32>
    %cst_9 = arith.constant -1.000000e+00 : f32
    %22 = vector.broadcast %cst_9 : f32 to vector<4x8xf32>
    %23 = arith.mulf %22, %21 : vector<4x8xf32>
    %24 = math.exp %23 : vector<4x8xf32>
    %25 = arith.mulf %24, %20 : vector<4x8xf32>
    %cst_10 = arith.constant 0.000000e+00 : f32
    %26 = vector.shape_cast %2 : vector<4x1xf32> to vector<4x1xf32>
    %27 = vector.broadcast %26 : vector<4x1xf32> to vector<4x8xf32>
    %28 = vector.broadcast %cst_10 : f32 to vector<4x8xf32>
    %29 = arith.select %5, %27, %28 : vector<4x8xi1>, vector<4x8xf32>
    %cst_11 = arith.constant dense<0.000000e+00> : vector<8xf32>
    %30 = vector.multi_reduction <add>, %29, %cst_11 [0] : vector<4x8xf32> to vector<8xf32>
    %31 = vector.shape_cast %30 : vector<8xf32> to vector<1x8xf32>
    %32 = vector.broadcast %31 : vector<1x8xf32> to vector<4x8xf32>
    %33 = arith.mulf %25, %32 : vector<4x8xf32>
    %34 = vector.shape_cast %33 : vector<4x8xf32> to vector<1x4x8xf32>
    %cst_12 = arith.constant dense<0.000000e+00> : vector<1xf32>
    %35 = vector.multi_reduction <add>, %34, %cst_12 [1, 2] : vector<1x4x8xf32> to vector<1xf32>
    %36 = vector.shape_cast %35 : vector<1xf32> to vector<1x1x1xf32>
    %37 = vector.extract %36[0, 0, 0] : f32 from vector<1x1x1xf32>
    %38 = vector.broadcast %37 : f32 to vector<1x1xf32>
    %c0_13 = arith.constant 0 : index
    %c0_14 = arith.constant 0 : index
    %39 = vector.load %arg4[%c0_13, %c0_14] : memref<1x1xf32, #tpu.memory_space<vmem>>, vector<1x1xf32>
    tpu.vector_store %arg4[%c0_13, %c0_14], %38 {strides = array<i32>} : memref<1x1xf32, #tpu.memory_space<vmem>>, vector<1x1xf32>,
    return
  }
  func.func @transform_0(%arg0: i32) -> (i32, i32) {
    %c0_i32 = arith.constant 0 : i32
    %c0_i32_0 = arith.constant 0 : i32
    return %c0_i32, %arg0 : i32, i32
  }
  func.func @transform_1(%arg0: i32) -> (i32, i32) {
    %c0_i32 = arith.constant 0 : i32
    %c0_i32_0 = arith.constant 0 : i32
    return %c0_i32, %arg0 : i32, i32
  }
  func.func @transform_2(%arg0: i32) -> (i32, i32) {
    %c0_i32 = arith.constant 0 : i32
    %c0_i32_0 = arith.constant 0 : i32
    %c0_i32_1 = arith.constant 0 : i32
    return %c0_i32, %c0_i32_0 : i32, i32
  }
  func.func @transform_3(%arg0: i32) -> (i32, i32) {
    %c0_i32 = arith.constant 0 : i32
    %c0_i32_0 = arith.constant 0 : i32
    return %arg0, %c0_i32 : i32, i32
  }
}

</mosaic_0001>

<llo_original>
// kernel: tpu_custom_call.1
$region0: #{tpu_custom_call.1}
  #allocation0 [shape = 'u32[]', space=smem, size = 0x4, offset = 0x4, fixed_abs, tag = 'smem constant byte address 0x4 - core index']
  #allocation1 [shape = 'u32[72,128]{1,0:T(1,128)}', space=vmem, size = 0x9000, scoped, tag = 'internal scratch']
  %s0 = inlined_call_operand.vmem [shape: f32[4,8], index: 0, kind: input, shape index: {}]
  %s1 = inlined_call_operand.vmem [shape: s32[1,8], index: 1, kind: input, shape index: {}]
  %s2 = inlined_call_operand.vmem [shape: f32[4,1], index: 2, kind: input, shape index: {}]
  %s3 = inlined_call_operand.hbm [shape: f32[1,1], index: 3, kind: output, shape index: {}]
  %s4 = sld [smem:[#allocation0]]
  $region22: #{tpu_custom_call.1} parent=0
    _
  %s6 = ssub.s32 1, %s4
  %s7 = scalar_select 0, %s6, %s4
  $region1: #{tpu_custom_call.1} parent=0
    #allocation2 [shape = 'u8[512]{0}', space=vmem, size = 0x400, scoped, tag = 'output window, operand 0, single buffered']
    #allocation3 [shape = 's32[1]{0}', space=sflag, size = 0x4, scoped, tag = 'scoped memory for tpu_custom_call.1']
    %8 = vsyncpa [#allocation3], 0
    // Predicated region
    $region2: #{tpu_custom_call.1} parent=1 // pred_check
      _
    $region3: #{tpu_custom_call.1} parent=1 // pred_check_branch
      %10 = sbr.rel (0) target = $region5
    $region4: #{tpu_custom_call.1} parent=1 // pred_region
      _
    $region5: #{tpu_custom_call.1} parent=1 // pred_fallthru
      _
    // Predicated region
    $region6: #{tpu_custom_call.1} parent=1 // pred_check
      _
    $region7: #{tpu_custom_call.1} parent=1 // pred_check_branch
      %12 = sbr.rel (0) target = $region9
    $region8: #{tpu_custom_call.1} parent=1 // pred_region
      _
    $region9: #{tpu_custom_call.1} parent=1 // pred_fallthru
      _
    // Predicated region
    $region10: #{tpu_custom_call.1} parent=1 // pred_check
      _
    $region11: #{tpu_custom_call.1} parent=1 // pred_check_branch
      %14 = sbr.rel (0) target = $region13
    $region12: #{tpu_custom_call.1} parent=1 // pred_region
      _
    $region13: #{tpu_custom_call.1} parent=1 // pred_fallthru
      _
    %v15 = vld [vmem:[%s0] sm:$0xf]
    %v16 = vld [vmem:[%s1] sm:$0x1]
    %v17 = vld [vmem:[%s2] sm:$0xf]
    %v18 = vlaneseq
    %v19 = vshrl.u32 %v18, 7
    %v20 = vperm.slane %v16, 0
    %vm21 = vcmp.eq.s32.totalorder %v19, %v20
    %v22 = vsub.f32 0.0, %v15
    %v23 = vsel %vm21, %v15, %v22
    %v24 = vsub.f32 0.0, %v23
    %v25 = vmax.f32 %v24, 0.0
    %v26 = vand.u32 2147483647, %v24
    %v27 = vsub.f32 0.0, %v26
    %v28 = vmul.f32 %v27, 1.442695
    %v29 = vpow.pop %v28
    %v30 = vadd.f32 %v29, 1.0
    %v31 = vlog2.pop %v30
    %v32 = vmul.f32 %v31, 0.6931472
    %v33 = vadd.f32 %v25, %v32
    %v34 = vadd.f32 %v23, %v33
    %v35 = vmul.f32 %v34, -1.0
    %v36 = vmul.f32 %v35, 1.442695
    %v37 = vpow.pop %v36
    %v38 = vmul.f32 %v37, %v33
    %40 = vset.pattern.permute.xlu0 0
    %41 = vperm.xlu0 %40, %v17
    %v42 = vpop.permute.xlu0 %41
    %v44 = vsel %vm21, %v42, 0.0
    %vm45 = vcmask 60416
    %v46 = vsel %vm45, %v44, 0.0
    %v47 = vrot.slane %v46, 4
    %v48 = vadd.f32 %v46, %v47
    %v49 = vrot.slane %v48, 2
    %v50 = vadd.f32 %v48, %v49
    %v51 = vrot.slane %v50, 1
    %v52 = vadd.f32 %v50, %v51
    %v53 = vmul.f32 %v38, %v52
    %v54 = vsel %vm45, %v53, 0.0
    %55 = vadd.xlane.f32.xlu0 %v54
    %v56 = vpop.xlane.xlu0 %55
    %v57 = vrot.slane %v56, 4
    %v58 = vadd.f32 %v56, %v57
    %v59 = vrot.slane %v58, 2
    %v60 = vadd.f32 %v58, %v59
    %v61 = vrot.slane %v60, 1
    %v62 = vadd.f32 %v60, %v61
    %s63 = vtos %v62
    %v64 = vstv %s63
    %vm65 = vcmask 0
    %66 = vst.msk [vmem:[#allocation2] sm:$0x1] %vm65, %v64
    // Predicated region
    $region14: #{tpu_custom_call.1} parent=1 // pred_check
      _
    $region15: #{tpu_custom_call.1} parent=1 // pred_check_branch
      %68 = sbr.rel (0) target = $region17
    $region16: #{tpu_custom_call.1} parent=1 // pred_region
      %70 = vsyncadd [#allocation3], 0
      %s72 = sshll.u32 [#allocation2], 4
      %s73 = int_to_ptr.vmem [resolvable:$true] %s72
      %s74 = sshll.u32 %s3, 4
      %s75 = int_to_ptr.hbm [resolvable:$true] %s74
      %77 = dma.vmem_to_hbm [thread:$0]  %s73, 16, %s75, [#allocation3]
    $region17: #{tpu_custom_call.1} parent=1 // pred_fallthru
      _
    // Predicated region
    $region18: #{tpu_custom_call.1} parent=1 // pred_check
      _
    $region19: #{tpu_custom_call.1} parent=1 // pred_check_branch
      %79 = sbr.rel (0) target = $region21
    $region20: #{tpu_custom_call.1} parent=1 // pred_region
      %81 = dma.done [#allocation3], 16
    $region21: #{tpu_custom_call.1} parent=1 // pred_fallthru
      _
    %82 = vsyncpa [#allocation3], 1

</llo_original>
